<compile_context>
chip_gen: v7x
topology: tpu7x:2x2x1
jax: 0.10.0
libtpu: 0.0.40
codegen_flags: <defaults>
</compile_context>

<pallas_src>
import functools

import jax
import jax.numpy as jnp
from jax.experimental import pallas as pl
from jax.experimental.pallas import tpu as pltpu

EPS = 1e-10
MATMUL_DTYPE = jnp.bfloat16          # MXU-native inputs; accumulation is f32.
VMEM_LIMIT_BYTES = 32 * 1024 * 1024  # explicit budget: fits v5e/v6e/v7x scoped VMEM.


def _mosaic_params(n_grid_axes=1):
    return pltpu.CompilerParams(
        dimension_semantics=("parallel",) * n_grid_axes,
        vmem_limit_bytes=VMEM_LIMIT_BYTES,
    )


# ----------------------------------------------------------------------------
# Pallas kernels
# ----------------------------------------------------------------------------
def _linear_kernel(x_ref, w_ref, b_ref, o_ref, *, act):
    y = jnp.dot(x_ref[...], w_ref[...], preferred_element_type=jnp.float32)
    y = y + b_ref[...]
    if act == "tanh":
        y = jnp.tanh(y)
    elif act == "exp_half":          # mimics torch `.mul(0.5).exp()`
        y = jnp.exp(0.5 * y)
    o_ref[...] = y


def pallas_linear(x, w, b, act="none", tm=1024):
    """x: (M, K), w: (K, N), b: (N,) -> (M, N) float32, row-tiled grid over M."""
    M, K = x.shape
    N = w.shape[1]
    TM = M if M <= tm else tm
    return pl.pallas_call(
        functools.partial(_linear_kernel, act=act),
        out_shape=jax.ShapeDtypeStruct((M, N), jnp.float32),
        grid=(pl.cdiv(M, TM),),
        in_specs=[
            pl.BlockSpec((TM, K), lambda i: (i, 0)),
            pl.BlockSpec((K, N), lambda i: (0, 0)),
            pl.BlockSpec((1, N), lambda i: (0, 0)),
        ],
        out_specs=pl.BlockSpec((TM, N), lambda i: (i, 0)),
        compiler_params=_mosaic_params(1),
    )(x.astype(MATMUL_DTYPE), w.astype(MATMUL_DTYPE),
      b.reshape(1, N).astype(jnp.float32))


def _time_group_kernel(em_ref, es_ref, tc_ref, tp_ref,
                       wme_ref, wmt_ref, wse_ref, wst_ref, bm_ref, bs_ref,
                       mc_ref, sc_ref, mp_ref, sp_ref):
    """One batch row: emb (L, E), time (1, E); produces mean/std x cur/pri (L, E)."""
    f32 = jnp.float32
    # embedding contribution — shared between the `cur` and `pri` time variants
    m_base = jnp.dot(em_ref[...], wme_ref[...], preferred_element_type=f32) + bm_ref[...]
    s_base = jnp.dot(es_ref[...], wse_ref[...], preferred_element_type=f32) + bs_ref[...]
    # time contributions, (1, E) broadcast over the L entities of this batch row
    tcm = jnp.dot(tc_ref[...], wmt_ref[...], preferred_element_type=f32)
    tcs = jnp.dot(tc_ref[...], wst_ref[...], preferred_element_type=f32)
    tpm = jnp.dot(tp_ref[...], wmt_ref[...], preferred_element_type=f32)
    tps = jnp.dot(tp_ref[...], wst_ref[...], preferred_element_type=f32)
    mc_ref[...] = m_base + tcm
    sc_ref[...] = jnp.exp(0.5 * (s_base + tcs))
    mp_ref[...] = m_base + tpm
    sp_ref[...] = jnp.exp(0.5 * (s_base + tps))


def pallas_time_group(emb_mean, emb_std, time_cur, time_pri, wm, bm, ws, bs):
    """Fused time-conditioned projections for one weight group (u / i / w).

    emb_mean, emb_std : (B, L, E) gathered embedding rows
    time_cur, time_pri: (B, E) time embeddings (broadcast over L inside the kernel)
    wm, ws            : (2E, E) Linear weights; split into emb/time halves here
    Returns (mean_cur, std_cur, mean_pri, std_pri), each (B, L, E) float32.
    """
    B, L, E = emb_mean.shape
    tc3 = time_cur.reshape(B, 1, E).astype(MATMUL_DTYPE)
    tp3 = time_pri.reshape(B, 1, E).astype(MATMUL_DTYPE)

    emb_spec = pl.BlockSpec((None, L, E), lambda b: (b, 0, 0))
    t_spec = pl.BlockSpec((None, 1, E), lambda b: (b, 0, 0))
    w_spec = pl.BlockSpec((E, E), lambda b: (0, 0))
    bias_spec = pl.BlockSpec((1, E), lambda b: (0, 0))
    out_sd = jax.ShapeDtypeStruct((B, L, E), jnp.float32)

    # TODO(synk): at production batch sizes, tile several batch rows per grid step
    # (flattened row blocks) instead of one row per step to fill the MXU better.
    return pl.pallas_call(
        _time_group_kernel,
        out_shape=(out_sd,) * 4,
        grid=(B,),
        in_specs=[emb_spec, emb_spec, t_spec, t_spec,
                  w_spec, w_spec, w_spec, w_spec, bias_spec, bias_spec],
        out_specs=(emb_spec,) * 4,
        compiler_params=_mosaic_params(1),
    )(emb_mean.astype(MATMUL_DTYPE), emb_std.astype(MATMUL_DTYPE), tc3, tp3,
      wm[:E].astype(MATMUL_DTYPE), wm[E:].astype(MATMUL_DTYPE),
      ws[:E].astype(MATMUL_DTYPE), ws[E:].astype(MATMUL_DTYPE),
      bm.reshape(1, E).astype(jnp.float32), bs.reshape(1, E).astype(jnp.float32))


def _transfer_kernel(x_ref, w1_ref, b1_ref, w2_ref, b2_ref, o_ref, *, E):
    """Fused transfer MLP: hidden stays resident; mean|std weights fused along N."""
    h = jnp.dot(x_ref[...], w1_ref[...], preferred_element_type=jnp.float32) + b1_ref[...]
    y = jnp.dot(h.astype(MATMUL_DTYPE), w2_ref[...],
                preferred_element_type=jnp.float32) + b2_ref[...]
    col = jax.lax.broadcasted_iota(jnp.int32, y.shape, 1)
    # columns [0, E) = transfer mean, [E, 2E) = transfer std -> exp(0.5 x)
    o_ref[...] = jnp.where(col < E, y, jnp.exp(0.5 * y))


def pallas_transfer(x, w1, b1, w2, b2, E, tm=1024):
    """x: (M, E); w1: (E, H); w2: (H, 2E) -> (M, 2E) = [mean | std]."""
    M, K = x.shape
    H = w1.shape[1]
    N = w2.shape[1]
    TM = M if M <= tm else tm
    return pl.pallas_call(
        functools.partial(_transfer_kernel, E=E),
        out_shape=jax.ShapeDtypeStruct((M, N), jnp.float32),
        grid=(pl.cdiv(M, TM),),
        in_specs=[
            pl.BlockSpec((TM, K), lambda i: (i, 0)),
            pl.BlockSpec((K, H), lambda i: (0, 0)),
            pl.BlockSpec((1, H), lambda i: (0, 0)),
            pl.BlockSpec((H, N), lambda i: (0, 0)),
            pl.BlockSpec((1, N), lambda i: (0, 0)),
        ],
        out_specs=pl.BlockSpec((TM, N), lambda i: (i, 0)),
        compiler_params=_mosaic_params(1),
    )(x.astype(MATMUL_DTYPE), w1.astype(MATMUL_DTYPE),
      b1.reshape(1, H).astype(jnp.float32),
      w2.astype(MATMUL_DTYPE), b2.reshape(1, N).astype(jnp.float32))


def _pair_dist_kernel(a_ref, b_ref, o_ref):
    diff = b_ref[...] - a_ref[...][:, None, :]          # anchor broadcast in-kernel
    o_ref[...] = jnp.sqrt(jnp.sum(diff * diff, axis=-1))


def pallas_pair_dist(a, b, tb=256):
    """a: (B, E) anchors, b: (B, L, E) -> (B, L) L2 distance over the embedding axis."""
    B, L, E = b.shape
    TB = B if B <= tb else tb
    return pl.pallas_call(
        _pair_dist_kernel,
        out_shape=jax.ShapeDtypeStruct((B, L), jnp.float32),
        grid=(pl.cdiv(B, TB),),
        in_specs=[pl.BlockSpec((TB, E), lambda i: (i, 0)),
                  pl.BlockSpec((TB, L, E), lambda i: (i, 0, 0))],
        out_specs=pl.BlockSpec((TB, L), lambda i: (i, 0)),
        compiler_params=_mosaic_params(1),
    )(a.astype(jnp.float32), b.astype(jnp.float32))


def _dkl_sum_kernel(m1_ref, s1_ref, m2_ref, s2_ref, o_ref):
    s1 = s1_ref[...]
    s2 = s2_ref[...]
    var1 = s1 * s1 + EPS
    var2 = s2 * s2 + EPS
    dm = m2_ref[...] - m1_ref[...]
    term = jnp.log(var2 / var1) - 1.0 + var1 / var2 + dm * dm / var2
    o_ref[0, 0] = 0.5 * jnp.sum(term)                    # scalar SMEM reduction


def pallas_dkl_sum(m1, s1, m2, s2):
    """All (M, E) -> scalar: 0.5 * sum of the Gaussian KL integrand over all rows."""
    vspec = pl.BlockSpec(memory_space=pltpu.MemorySpace.VMEM)
    out = pl.pallas_call(
        _dkl_sum_kernel,
        out_shape=jax.ShapeDtypeStruct((1, 1), jnp.float32),
        in_specs=[vspec, vspec, vspec, vspec],
        out_specs=pl.BlockSpec(memory_space=pltpu.MemorySpace.SMEM),
    )(m1.astype(jnp.float32), s1.astype(jnp.float32),
      m2.astype(jnp.float32), s2.astype(jnp.float32))
    return out[0, 0]


# ----------------------------------------------------------------------------
# Parameter init (deterministic, synthetic — mirrors the module's __init__ shapes)
# ----------------------------------------------------------------------------
def init_params(key, cfg):
    E = cfg["embedding_dim"]
    H = cfg["transfer_hidden_dim"]
    keys = list(jax.random.split(key, 32))
    it = iter(keys)

    def lin(fan_in, fan_out):
        kw, kb = jax.random.split(next(it))
        return {
            "w": jax.random.normal(kw, (fan_in, fan_out), jnp.float32) * 0.1,
            "b": jax.random.normal(kb, (fan_out,), jnp.float32) * 0.01,
        }

    p = {}
    p["time_embedding"] = jax.random.normal(next(it), (cfg["time_num"], E), jnp.float32)
    for name in ["time2mean_u", "time2mean_i", "time2mean_w",
                 "time2std_i", "time2std_u", "time2std_w"]:
        p[name] = lin(2 * E, E)
    # embedding tables follow the module's explicit _weight init (ones / zeros)
    p["user_mean"] = jnp.ones((cfg["user_size"], E), jnp.float32)
    p["user_std"] = jnp.zeros((cfg["user_size"], E), jnp.float32)
    p["item_mean"] = jnp.ones((cfg["item_size"], E), jnp.float32)
    p["item_std"] = jnp.zeros((cfg["item_size"], E), jnp.float32)
    p["word_mean"] = jnp.ones((cfg["word_size"], E), jnp.float32)
    p["word_std"] = jnp.zeros((cfg["word_size"], E), jnp.float32)
    p["queryLinear"] = lin(E, E)
    for aim in ["u", "i", "ni", "w", "nw"]:
        p["transfer_linear_" + aim] = lin(E, H)
        p["transfer_mean_" + aim] = lin(H, E)
        p["transfer_std_" + aim] = lin(H, E)
    return p


# ----------------------------------------------------------------------------
# Model pieces (glue around Pallas kernels)
# ----------------------------------------------------------------------------
def reparameter(key, mean, std, sigma):
    # TODO(synk): noise comes from jax.random, not torch.randn — values differ,
    # semantics (N(0,1) noise) match.
    noise = jax.random.normal(key, std.shape, jnp.float32)
    return mean + sigma * std * noise


def get_train_query_tanh_mean(params, query, query_len, max_query_len):
    q_emb = params["word_mean"][query]                             # (B, Lq, E)
    mask = (jnp.arange(max_query_len)[None, :] < query_len[:, None]).astype(jnp.float32)
    q = jnp.sum(q_emb * mask[:, :, None], axis=1) / query_len[:, None].astype(jnp.float32)
    p = params["queryLinear"]
    return pallas_linear(q, p["w"], p["b"], act="tanh")


def transfer_prior(params, key, pri_mean, pri_std, aim, dim3, cfg):
    """Monte-Carlo transfer of the prior; returns (acc_mean, acc_std), each (M, E)."""
    E = cfg["embedding_dim"]
    S = cfg["sample_num"]
    sigma = cfg["sigma_parameter"]
    pm = pri_mean.reshape(-1, E)
    ps = pri_std.reshape(-1, E)
    M = pm.shape[0]
    noise = jax.random.normal(key, (S, M, E), jnp.float32)
    samples = (pm[None] + sigma * ps[None] * noise).reshape(S * M, E)   # all samples in one M
    lin = params["transfer_linear_" + aim]
    w2 = jnp.concatenate([params["transfer_mean_" + aim]["w"],
                          params["transfer_std_" + aim]["w"]], axis=1)  # (H, 2E)
    b2 = jnp.concatenate([params["transfer_mean_" + aim]["b"],
                          params["transfer_std_" + aim]["b"]], axis=0)  # (2E,)
    y = pallas_transfer(samples, lin["w"], lin["b"], w2, b2, E).reshape(S, M, 2 * E)
    acc = jnp.sum(y, axis=0)
    acc_mean = acc[:, :E] / S
    # NOTE: the reference divides the accumulated std by sample_num**2 in the 2D
    # branch but by sample_num in the 3D branch; keep that asymmetry verbatim.
    acc_std = acc[:, E:] / (S if dim3 else S * S)
    return acc_mean, acc_std


# ----------------------------------------------------------------------------
# Full forward pass
# ----------------------------------------------------------------------------
def psm_forward(params, inputs, key, cfg):
    (user, item_pos, query, query_len, word, word_len,
     times, items_neg, word_neg) = inputs
    B = user.shape[0]
    E = cfg["embedding_dim"]
    Lr = cfg["max_review_len"]
    sigma = cfg["sigma_parameter"]

    time_laten = params["time_embedding"][times + 1]        # (B, E)
    pri_time_laten = params["time_embedding"][times]        # (B, E)

    def time_group(aim, emb_mean3, emb_std3):
        return pallas_time_group(
            emb_mean3, emb_std3, time_laten, pri_time_laten,
            params["time2mean_" + aim]["w"], params["time2mean_" + aim]["b"],
            params["time2std_" + aim]["w"], params["time2std_" + aim]["b"])

    # --- user: one fused call -> mean/std x cur/pri ---
    u_mc, u_sc, u_mp, u_sp = time_group(
        "u", params["user_mean"][user][:, None, :], params["user_std"][user][:, None, :])
    user_mean, user_std = u_mc[:, 0], u_sc[:, 0]
    user_mean_pri, user_std_pri = u_mp[:, 0], u_sp[:, 0]

    # --- items: positive item folded in as entity 0 of the negatives ---
    items_all_idx = jnp.concatenate([item_pos[:, None], items_neg], axis=1)   # (B, 1+Nn)
    i_mc, i_sc, i_mp, i_sp = time_group(
        "i", params["item_mean"][items_all_idx], params["item_std"][items_all_idx])
    item_mean_pos, item_std_pos = i_mc[:, 0], i_sc[:, 0]
    item_mean_pos_pri, item_std_pos_pri = i_mp[:, 0], i_sp[:, 0]
    items_mean_neg, items_std_neg = i_mc[:, 1:], i_sc[:, 1:]
    items_mean_neg_pri, items_std_neg_pri = i_mp[:, 1:], i_sp[:, 1:]

    # --- words: positive review words and negative words stacked along L ---
    words_all_idx = jnp.concatenate([word, word_neg], axis=1)                 # (B, 2*Lr)
    w_mc, w_sc, w_mp, w_sp = time_group(
        "w", params["word_mean"][words_all_idx], params["word_std"][words_all_idx])
    word_mean_pos, word_std_pos = w_mc[:, :Lr], w_sc[:, :Lr]
    word_mean_pos_pri, word_std_pos_pri = w_mp[:, :Lr], w_sp[:, :Lr]
    word_mean_neg, word_std_neg = w_mc[:, Lr:], w_sc[:, Lr:]
    word_mean_neg_pri, word_std_neg_pri = w_mp[:, Lr:], w_sp[:, Lr:]

    # --- query ---
    query_vec = get_train_query_tanh_mean(params, query, query_len, cfg["max_query_len"])

    # --- latent sampling (reparameterization) ---
    keys = jax.random.split(key, 10)
    user_sample = reparameter(keys[0], user_mean, user_std, sigma)
    product_sample = reparameter(keys[1], item_mean_pos, item_std_pos, sigma)
    product_sample_neg = reparameter(keys[2], items_mean_neg, items_std_neg, sigma)
    word_sample = reparameter(keys[3], word_mean_pos, word_std_pos, sigma)
    word_sample_neg = reparameter(keys[4], word_mean_neg, word_std_neg, sigma)

    # --- main loss: pos item folded into the same distance call as the negatives ---
    u_plus_q = user_sample + query_vec
    items_cat = jnp.concatenate([product_sample[:, None, :], product_sample_neg], axis=1)
    d_items = pallas_pair_dist(u_plus_q, items_cat)        # (B, 1+Nn)
    dis_pos = d_items[:, 0] * 5.0
    dis_neg = d_items[:, 1:]
    batch_loss = -jnp.sum(jnp.log(jax.nn.sigmoid(dis_neg - dis_pos[:, None])), axis=1)
    loss_main = jnp.mean(batch_loss)
    dis_pos_mean = jnp.mean(dis_pos)
    dis_neg_mean = jnp.mean(dis_neg)

    # --- word losses: pos (masked) and neg words in one distance call per anchor ---
    rmask = (jnp.arange(Lr)[None, :] < word_len[:, None]).astype(jnp.float32)
    word_pos_masked = word_sample * rmask[:, :, None]
    words_cat = jnp.concatenate([word_pos_masked, word_sample_neg], axis=1)   # (B, 2Lr, E)

    def word_loss(anchor):
        d = pallas_pair_dist(anchor, words_cat)            # (B, 2Lr)
        dp = jnp.mean(d[:, :Lr], axis=1)
        dn = jnp.mean(d[:, Lr:], axis=1)
        return -jnp.mean(jnp.log(jax.nn.sigmoid(dn - dp)))

    user_word_loss = word_loss(user_sample)
    item_word_loss = word_loss(product_sample)

    # --- transfer / KL losses ---
    groups = [
        (user_mean, user_std, user_mean_pri, user_std_pri, False, "u"),
        (item_mean_pos, item_std_pos, item_mean_pos_pri, item_std_pos_pri, False, "i"),
        (items_mean_neg, items_std_neg, items_mean_neg_pri, items_std_neg_pri, True, "ni"),
        (word_mean_pos, word_std_pos, word_mean_pos_pri, word_std_pos_pri, True, "w"),
        (word_mean_neg, word_std_neg, word_mean_neg_pri, word_std_neg_pri, True, "nw"),
    ]
    cm_all, cs_all, am_all, as_all = [], [], [], []
    for gi, (cm, cs, pm, ps, dim3, aim) in enumerate(groups):
        am, asd = transfer_prior(params, keys[5 + gi], pm, ps, aim, dim3, cfg)
        cm_all.append(cm.reshape(-1, E))
        cs_all.append(cs.reshape(-1, E))
        am_all.append(am)
        as_all.append(asd)
    # Every group KL reduces to (sum over rows)/batch with the same weight, so one
    # fused scalar-reducing DKL call computes their sum exactly.
    kl_sum = pallas_dkl_sum(
        jnp.concatenate(cm_all, 0), jnp.concatenate(cs_all, 0),
        jnp.concatenate(am_all, 0), jnp.concatenate(as_all, 0)) / B

    word_sum = user_word_loss + item_word_loss
    loss_total = loss_main + word_sum * cfg["word_parameter"] + kl_sum * cfg["kl_parameter"]
    loss = (loss_total, loss_main, word_sum, kl_sum)

    return (user_mean, user_std, query_vec, item_mean_pos, item_std_pos,
            items_mean_neg, items_std_neg, user_sample, product_sample,
            product_sample_neg, loss, dis_pos_mean, dis_neg_mean,
            word_mean_pos, word_std_pos, word_mean_neg, word_std_neg)


# ----------------------------------------------------------------------------
# Driver
# ----------------------------------------------------------------------------
if __name__ == "__main__":
    cfg = dict(user_size=10, item_size=12, word_size=20, embedding_dim=32,
               max_query_len=8, max_review_len=8, batch_size=2, time_num=6,
               neg_num=5, sample_num=1, transfer_hidden_dim=32,
               sigma_parameter=1.0, kl_parameter=1.0, word_parameter=1.0)

    root = jax.random.PRNGKey(0)
    pkey, dkey, fkey = jax.random.split(root, 3)
    params = init_params(pkey, cfg)

    B = 2
    ks = jax.random.split(dkey, 9)
    user = jax.random.randint(ks[0], (B,), 0, cfg["user_size"])
    item_pos = jax.random.randint(ks[1], (B,), 0, cfg["item_size"])
    query = jax.random.randint(ks[2], (B, cfg["max_query_len"]), 1, cfg["word_size"])
    query_len = jax.random.randint(ks[3], (B,), 1, cfg["max_query_len"] + 1)
    word = jax.random.randint(ks[4], (B, cfg["max_review_len"]), 1, cfg["word_size"])
    word_len = jax.random.randint(ks[5], (B,), 1, cfg["max_review_len"] + 1)
    times = jax.random.randint(ks[6], (B,), 0, cfg["time_num"] - 1)
    items_neg = jax.random.randint(ks[7], (B, cfg["neg_num"]), 0, cfg["item_size"])
    word_neg = jax.random.randint(ks[8], (B, cfg["max_review_len"]), 1, cfg["word_size"])

    inputs = (user, item_pos, query, query_len, word, word_len, times, items_neg, word_neg)
    out = psm_forward(params, inputs, fkey, cfg)
    jax.block_until_ready(out)
    print("KERNEL_OK")
</pallas_src>

<mosaic_0001>
module attributes {stable_mosaic.version = 11 : i64} {
  func.func @_time_group_kernel(%arg0: i32, %arg1: memref<1x1x32xbf16, #tpu.memory_space<vmem>>, %arg2: memref<1x1x32xbf16, #tpu.memory_space<vmem>>, %arg3: memref<1x1x32xbf16, #tpu.memory_space<vmem>>, %arg4: memref<1x1x32xbf16, #tpu.memory_space<vmem>>, %arg5: memref<32x32xbf16, #tpu.memory_space<vmem>>, %arg6: memref<32x32xbf16, #tpu.memory_space<vmem>>, %arg7: memref<32x32xbf16, #tpu.memory_space<vmem>>, %arg8: memref<32x32xbf16, #tpu.memory_space<vmem>>, %arg9: memref<1x32xf32, #tpu.memory_space<vmem>>, %arg10: memref<1x32xf32, #tpu.memory_space<vmem>>, %arg11: memref<1x1x32xf32, #tpu.memory_space<vmem>>, %arg12: memref<1x1x32xf32, #tpu.memory_space<vmem>>, %arg13: memref<1x1x32xf32, #tpu.memory_space<vmem>>, %arg14: memref<1x1x32xf32, #tpu.memory_space<vmem>>) attributes {dimension_semantics = [#tpu.dimension_semantics<parallel>], iteration_bounds = array<i64: 2>, scalar_prefetch = 0 : i64, scratch_operands = 0 : i64, tpu.core_type = #tpu.core_type<tc>, window_params = [{transform_indices = @transform_0, window_bounds = array<i64: 1, 1, 32>}, {transform_indices = @transform_1, window_bounds = array<i64: 1, 1, 32>}, {transform_indices = @transform_2, window_bounds = array<i64: 1, 1, 32>}, {transform_indices = @transform_3, window_bounds = array<i64: 1, 1, 32>}, {pipeline_mode = #tpu.pipeline_mode<synchronous>, transform_indices = @transform_4, window_bounds = array<i64: 32, 32>}, {pipeline_mode = #tpu.pipeline_mode<synchronous>, transform_indices = @transform_5, window_bounds = array<i64: 32, 32>}, {pipeline_mode = #tpu.pipeline_mode<synchronous>, transform_indices = @transform_6, window_bounds = array<i64: 32, 32>}, {pipeline_mode = #tpu.pipeline_mode<synchronous>, transform_indices = @transform_7, window_bounds = array<i64: 32, 32>}, {pipeline_mode = #tpu.pipeline_mode<synchronous>, transform_indices = @transform_8, window_bounds = array<i64: 1, 32>}, {pipeline_mode = #tpu.pipeline_mode<synchronous>, transform_indices = @transform_9, window_bounds = array<i64: 1, 32>}, {transform_indices = @transform_10, window_bounds = array<i64: 1, 1, 32>}, {transform_indices = @transform_11, window_bounds = array<i64: 1, 1, 32>}, {transform_indices = @transform_12, window_bounds = array<i64: 1, 1, 32>}, {transform_indices = @transform_13, window_bounds = array<i64: 1, 1, 32>}]} {
    %c0 = arith.constant 0 : index
    %c0_0 = arith.constant 0 : index
    %c0_1 = arith.constant 0 : index
    %0 = vector.load %arg1[%c0, %c0_0, %c0_1] : memref<1x1x32xbf16, #tpu.memory_space<vmem>>, vector<1x1x32xbf16>
    %1 = vector.shape_cast %0 : vector<1x1x32xbf16> to vector<1x32xbf16>
    %c0_2 = arith.constant 0 : index
    %c0_3 = arith.constant 0 : index
    %2 = vector.load %arg5[%c0_2, %c0_3] : memref<32x32xbf16, #tpu.memory_space<vmem>>, vector<32x32xbf16>
    %cst = arith.constant dense<0.000000e+00> : vector<1x32xf32>
    %3 = tpu.matmul %1, %2, %cst {dimension_numbers = #tpu.dot_dimension_numbers<[1], [0], [0], [1], [0, 0, 1, 1], [], []>} : vector<1x32xbf16>, vector<32x32xbf16>, vector<1x32xf32> -> vector<1x32xf32>
    %c0_4 = arith.constant 0 : index
    %c0_5 = arith.constant 0 : index
    %4 = vector.load %arg9[%c0_4, %c0_5] : memref<1x32xf32, #tpu.memory_space<vmem>>, vector<1x32xf32>
    %5 = arith.addf %3, %4 : vector<1x32xf32>
    %c0_6 = arith.constant 0 : index
    %c0_7 = arith.constant 0 : index
    %c0_8 = arith.constant 0 : index
    %6 = vector.load %arg2[%c0_6, %c0_7, %c0_8] : memref<1x1x32xbf16, #tpu.memory_space<vmem>>, vector<1x1x32xbf16>
    %7 = vector.shape_cast %6 : vector<1x1x32xbf16> to vector<1x32xbf16>
    %c0_9 = arith.constant 0 : index
    %c0_10 = arith.constant 0 : index
    %8 = vector.load %arg7[%c0_9, %c0_10] : memref<32x32xbf16, #tpu.memory_space<vmem>>, vector<32x32xbf16>
    %cst_11 = arith.constant dense<0.000000e+00> : vector<1x32xf32>
    %9 = tpu.matmul %7, %8, %cst_11 {dimension_numbers = #tpu.dot_dimension_numbers<[1], [0], [0], [1], [0, 0, 1, 1], [], []>} : vector<1x32xbf16>, vector<32x32xbf16>, vector<1x32xf32> -> vector<1x32xf32>
    %c0_12 = arith.constant 0 : index
    %c0_13 = arith.constant 0 : index
    %10 = vector.load %arg10[%c0_12, %c0_13] : memref<1x32xf32, #tpu.memory_space<vmem>>, vector<1x32xf32>
    %11 = arith.addf %9, %10 : vector<1x32xf32>
    %c0_14 = arith.constant 0 : index
    %c0_15 = arith.constant 0 : index
    %c0_16 = arith.constant 0 : index
    %12 = vector.load %arg3[%c0_14, %c0_15, %c0_16] : memref<1x1x32xbf16, #tpu.memory_space<vmem>>, vector<1x1x32xbf16>
    %13 = vector.shape_cast %12 : vector<1x1x32xbf16> to vector<1x32xbf16>
    %c0_17 = arith.constant 0 : index
    %c0_18 = arith.constant 0 : index
    %14 = vector.load %arg6[%c0_17, %c0_18] : memref<32x32xbf16, #tpu.memory_space<vmem>>, vector<32x32xbf16>
    %cst_19 = arith.constant dense<0.000000e+00> : vector<1x32xf32>
    %15 = tpu.matmul %13, %14, %cst_19 {dimension_numbers = #tpu.dot_dimension_numbers<[1], [0], [0], [1], [0, 0, 1, 1], [], []>} : vector<1x32xbf16>, vector<32x32xbf16>, vector<1x32xf32> -> vector<1x32xf32>
    %c0_20 = arith.constant 0 : index
    %c0_21 = arith.constant 0 : index
    %c0_22 = arith.constant 0 : index
    %16 = vector.load %arg3[%c0_20, %c0_21, %c0_22] : memref<1x1x32xbf16, #tpu.memory_space<vmem>>, vector<1x1x32xbf16>
    %17 = vector.shape_cast %16 : vector<1x1x32xbf16> to vector<1x32xbf16>
    %c0_23 = arith.constant 0 : index
    %c0_24 = arith.constant 0 : index
    %18 = vector.load %arg8[%c0_23, %c0_24] : memref<32x32xbf16, #tpu.memory_space<vmem>>, vector<32x32xbf16>
    %cst_25 = arith.constant dense<0.000000e+00> : vector<1x32xf32>
    %19 = tpu.matmul %17, %18, %cst_25 {dimension_numbers = #tpu.dot_dimension_numbers<[1], [0], [0], [1], [0, 0, 1, 1], [], []>} : vector<1x32xbf16>, vector<32x32xbf16>, vector<1x32xf32> -> vector<1x32xf32>
    %c0_26 = arith.constant 0 : index
    %c0_27 = arith.constant 0 : index
    %c0_28 = arith.constant 0 : index
    %20 = vector.load %arg4[%c0_26, %c0_27, %c0_28] : memref<1x1x32xbf16, #tpu.memory_space<vmem>>, vector<1x1x32xbf16>
    %21 = vector.shape_cast %20 : vector<1x1x32xbf16> to vector<1x32xbf16>
    %c0_29 = arith.constant 0 : index
    %c0_30 = arith.constant 0 : index
    %22 = vector.load %arg6[%c0_29, %c0_30] : memref<32x32xbf16, #tpu.memory_space<vmem>>, vector<32x32xbf16>
    %cst_31 = arith.constant dense<0.000000e+00> : vector<1x32xf32>
    %23 = tpu.matmul %21, %22, %cst_31 {dimension_numbers = #tpu.dot_dimension_numbers<[1], [0], [0], [1], [0, 0, 1, 1], [], []>} : vector<1x32xbf16>, vector<32x32xbf16>, vector<1x32xf32> -> vector<1x32xf32>
    %c0_32 = arith.constant 0 : index
    %c0_33 = arith.constant 0 : index
    %c0_34 = arith.constant 0 : index
    %24 = vector.load %arg4[%c0_32, %c0_33, %c0_34] : memref<1x1x32xbf16, #tpu.memory_space<vmem>>, vector<1x1x32xbf16>
    %25 = vector.shape_cast %24 : vector<1x1x32xbf16> to vector<1x32xbf16>
    %c0_35 = arith.constant 0 : index
    %c0_36 = arith.constant 0 : index
    %26 = vector.load %arg8[%c0_35, %c0_36] : memref<32x32xbf16, #tpu.memory_space<vmem>>, vector<32x32xbf16>
    %cst_37 = arith.constant dense<0.000000e+00> : vector<1x32xf32>
    %27 = tpu.matmul %25, %26, %cst_37 {dimension_numbers = #tpu.dot_dimension_numbers<[1], [0], [0], [1], [0, 0, 1, 1], [], []>} : vector<1x32xbf16>, vector<32x32xbf16>, vector<1x32xf32> -> vector<1x32xf32>
    %28 = arith.addf %5, %15 : vector<1x32xf32>
    %c0_38 = arith.constant 0 : index
    %c0_39 = arith.constant 0 : index
    %c0_40 = arith.constant 0 : index
    %29 = vector.load %arg11[%c0_38, %c0_39, %c0_40] : memref<1x1x32xf32, #tpu.memory_space<vmem>>, vector<1x1x32xf32>
    %30 = vector.shape_cast %29 : vector<1x1x32xf32> to vector<1x32xf32>
    %31 = vector.shape_cast %28 : vector<1x32xf32> to vector<1x1x32xf32>
    tpu.vector_store %arg11[%c0_38, %c0_39, %c0_40], %31 {strides = array<i32>} : memref<1x1x32xf32, #tpu.memory_space<vmem>>, vector<1x1x32xf32>,
    %32 = arith.addf %11, %19 : vector<1x32xf32>
    %cst_41 = arith.constant 5.000000e-01 : f32
    %33 = vector.broadcast %cst_41 : f32 to vector<1x32xf32>
    %34 = arith.mulf %33, %32 : vector<1x32xf32>
    %35 = math.exp %34 : vector<1x32xf32>
    %c0_42 = arith.constant 0 : index
    %c0_43 = arith.constant 0 : index
    %c0_44 = arith.constant 0 : index
    %36 = vector.load %arg12[%c0_42, %c0_43, %c0_44] : memref<1x1x32xf32, #tpu.memory_space<vmem>>, vector<1x1x32xf32>
    %37 = vector.shape_cast %36 : vector<1x1x32xf32> to vector<1x32xf32>
    %38 = vector.shape_cast %35 : vector<1x32xf32> to vector<1x1x32xf32>
    tpu.vector_store %arg12[%c0_42, %c0_43, %c0_44], %38 {strides = array<i32>} : memref<1x1x32xf32, #tpu.memory_space<vmem>>, vector<1x1x32xf32>,
    %39 = arith.addf %5, %23 : vector<1x32xf32>
    %c0_45 = arith.constant 0 : index
    %c0_46 = arith.constant 0 : index
    %c0_47 = arith.constant 0 : index
    %40 = vector.load %arg13[%c0_45, %c0_46, %c0_47] : memref<1x1x32xf32, #tpu.memory_space<vmem>>, vector<1x1x32xf32>
    %41 = vector.shape_cast %40 : vector<1x1x32xf32> to vector<1x32xf32>
    %42 = vector.shape_cast %39 : vector<1x32xf32> to vector<1x1x32xf32>
    tpu.vector_store %arg13[%c0_45, %c0_46, %c0_47], %42 {strides = array<i32>} : memref<1x1x32xf32, #tpu.memory_space<vmem>>, vector<1x1x32xf32>,
    %43 = arith.addf %11, %27 : vector<1x32xf32>
    %cst_48 = arith.constant 5.000000e-01 : f32
    %44 = vector.broadcast %cst_48 : f32 to vector<1x32xf32>
    %45 = arith.mulf %44, %43 : vector<1x32xf32>
    %46 = math.exp %45 : vector<1x32xf32>
    %c0_49 = arith.constant 0 : index
    %c0_50 = arith.constant 0 : index
    %c0_51 = arith.constant 0 : index
    %47 = vector.load %arg14[%c0_49, %c0_50, %c0_51] : memref<1x1x32xf32, #tpu.memory_space<vmem>>, vector<1x1x32xf32>
    %48 = vector.shape_cast %47 : vector<1x1x32xf32> to vector<1x32xf32>
    %49 = vector.shape_cast %46 : vector<1x32xf32> to vector<1x1x32xf32>
    tpu.vector_store %arg14[%c0_49, %c0_50, %c0_51], %49 {strides = array<i32>} : memref<1x1x32xf32, #tpu.memory_space<vmem>>, vector<1x1x32xf32>,
    return
  }
  func.func @transform_0(%arg0: i32) -> (i32, i32, i32) {
    %c0_i32 = arith.constant 0 : i32
    %c0_i32_0 = arith.constant 0 : i32
    %c0_i32_1 = arith.constant 0 : i32
    return %arg0, %c0_i32, %c0_i32_0 : i32, i32, i32
  }
  func.func @transform_1(%arg0: i32) -> (i32, i32, i32) {
    %c0_i32 = arith.constant 0 : i32
    %c0_i32_0 = arith.constant 0 : i32
    %c0_i32_1 = arith.constant 0 : i32
    return %arg0, %c0_i32, %c0_i32_0 : i32, i32, i32
  }
  func.func @transform_2(%arg0: i32) -> (i32, i32, i32) {
    %c0_i32 = arith.constant 0 : i32
    %c0_i32_0 = arith.constant 0 : i32
    %c0_i32_1 = arith.constant 0 : i32
    return %arg0, %c0_i32, %c0_i32_0 : i32, i32, i32
  }
  func.func @transform_3(%arg0: i32) -> (i32, i32, i32) {
    %c0_i32 = arith.constant 0 : i32
    %c0_i32_0 = arith.constant 0 : i32
    %c0_i32_1 = arith.constant 0 : i32
    return %arg0, %c0_i32, %c0_i32_0 : i32, i32, i32
  }
  func.func @transform_4(%arg0: i32) -> (i32, i32) {
    %c0_i32 = arith.constant 0 : i32
    %c0_i32_0 = arith.constant 0 : i32
    %c0_i32_1 = arith.constant 0 : i32
    return %c0_i32, %c0_i32_0 : i32, i32
  }
  func.func @transform_5(%arg0: i32) -> (i32, i32) {
    %c0_i32 = arith.constant 0 : i32
    %c0_i32_0 = arith.constant 0 : i32
    %c0_i32_1 = arith.constant 0 : i32
    return %c0_i32, %c0_i32_0 : i32, i32
  }
  func.func @transform_6(%arg0: i32) -> (i32, i32) {
    %c0_i32 = arith.constant 0 : i32
    %c0_i32_0 = arith.constant 0 : i32
    %c0_i32_1 = arith.constant 0 : i32
    return %c0_i32, %c0_i32_0 : i32, i32
  }
  func.func @transform_7(%arg0: i32) -> (i32, i32) {
    %c0_i32 = arith.constant 0 : i32
    %c0_i32_0 = arith.constant 0 : i32
    %c0_i32_1 = arith.constant 0 : i32
    return %c0_i32, %c0_i32_0 : i32, i32
  }
  func.func @transform_8(%arg0: i32) -> (i32, i32) {
    %c0_i32 = arith.constant 0 : i32
    %c0_i32_0 = arith.constant 0 : i32
    %c0_i32_1 = arith.constant 0 : i32
    return %c0_i32, %c0_i32_0 : i32, i32
  }
  func.func @transform_9(%arg0: i32) -> (i32, i32) {
    %c0_i32 = arith.constant 0 : i32
    %c0_i32_0 = arith.constant 0 : i32
    %c0_i32_1 = arith.constant 0 : i32
    return %c0_i32, %c0_i32_0 : i32, i32
  }
  func.func @transform_10(%arg0: i32) -> (i32, i32, i32) {
    %c0_i32 = arith.constant 0 : i32
    %c0_i32_0 = arith.constant 0 : i32
    %c0_i32_1 = arith.constant 0 : i32
    return %arg0, %c0_i32, %c0_i32_0 : i32, i32, i32
  }
  func.func @transform_11(%arg0: i32) -> (i32, i32, i32) {
    %c0_i32 = arith.constant 0 : i32
    %c0_i32_0 = arith.constant 0 : i32
    %c0_i32_1 = arith.constant 0 : i32
    return %arg0, %c0_i32, %c0_i32_0 : i32, i32, i32
  }
  func.func @transform_12(%arg0: i32) -> (i32, i32, i32) {
    %c0_i32 = arith.constant 0 : i32
    %c0_i32_0 = arith.constant 0 : i32
    %c0_i32_1 = arith.constant 0 : i32
    return %arg0, %c0_i32, %c0_i32_0 : i32, i32, i32
  }
  func.func @transform_13(%arg0: i32) -> (i32, i32, i32) {
    %c0_i32 = arith.constant 0 : i32
    %c0_i32_0 = arith.constant 0 : i32
    %c0_i32_1 = arith.constant 0 : i32
    return %arg0, %c0_i32, %c0_i32_0 : i32, i32, i32
  }
}

</mosaic_0001>

<llo_original>
// kernel: tpu_custom_call.1
$region0: #{tpu_custom_call.1}
  #allocation0 [shape = 'u32[]', space=smem, size = 0x4, offset = 0x4, fixed_abs, tag = 'smem constant byte address 0x4 - core index']
  #allocation1 [shape = 'u32[144,128]{1,0:T(1,128)}', space=vmem, size = 0x12000, scoped, tag = 'internal scratch']
  %s0 = inlined_call_operand.vmem [shape: bf16[2,1,32], index: 0, kind: input, shape index: {}]
  %s1 = inlined_call_operand.vmem [shape: bf16[2,1,32], index: 1, kind: input, shape index: {}]
  %s2 = inlined_call_operand.vmem [shape: bf16[2,1,32], index: 2, kind: input, shape index: {}]
  %s3 = inlined_call_operand.vmem [shape: bf16[2,1,32], index: 3, kind: input, shape index: {}]
  %s4 = inlined_call_operand.vmem [shape: bf16[32,32], index: 4, kind: input, shape index: {}]
  %s5 = inlined_call_operand.vmem [shape: bf16[32,32], index: 5, kind: input, shape index: {}]
  %s6 = inlined_call_operand.hbm [shape: bf16[32,32], index: 6, kind: input, shape index: {}]
  %s7 = inlined_call_operand.hbm [shape: bf16[32,32], index: 7, kind: input, shape index: {}]
  %s8 = inlined_call_operand.vmem [shape: f32[1,32], index: 8, kind: input, shape index: {}]
  %s9 = inlined_call_operand.vmem [shape: f32[1,32], index: 9, kind: input, shape index: {}]
  %s10 = inlined_call_operand.hbm [shape: f32[2,1,32], index: 10, kind: output, shape index: {0}]
  %s11 = inlined_call_operand.hbm [shape: f32[2,1,32], index: 11, kind: output, shape index: {1}]
  %s12 = inlined_call_operand.hbm [shape: f32[2,1,32], index: 12, kind: output, shape index: {2}]
  %s13 = inlined_call_operand.hbm [shape: f32[2,1,32], index: 13, kind: output, shape index: {3}]
  %14 = xla_tuple %s10, %s11, %s12, %s13
  %s15 = sld [smem:[#allocation0]]
  $region105: #{tpu_custom_call.1} parent=0
    _
  %s17 = ssub.s32 1, %s15
  %s18 = scalar_select 0, %s17, %s15
  $region1: #{tpu_custom_call.1} parent=0
    #allocation2 [shape = 'u8[8192]{0}', space=vmem, size = 0x2000, scoped, tag = 'input window, operand 6, single buffered']
    #allocation3 [shape = 's32[2]{0}', space=sflag, size = 0x8, scoped, tag = 'scoped memory for tpu_custom_call.1']
    #allocation4 [shape = 's32[2]{0}', space=sflag, size = 0x8, scoped, tag = 'scoped memory for tpu_custom_call.1']
    #allocation5 [shape = 'u8[8192]{0}', space=vmem, size = 0x2000, scoped, tag = 'input window, operand 7, single buffered']
    #allocation6 [shape = 's32[1]{0}', space=sflag, size = 0x4, scoped, tag = 'scoped memory for tpu_custom_call.1']
    #allocation7 [shape = 'u8[1024]{0}', space=vmem, size = 0x400, scoped, tag = 'output window, operand 0']
    #allocation8 [shape = 'u8[1024]{0}', space=vmem, size = 0x400, scoped, tag = 'output window, operand 1']
    #allocation9 [shape = 's32[2]{0}', space=sflag, size = 0x8, scoped, tag = 'scoped memory for tpu_custom_call.1']
    #allocation10 [shape = 'u8[1024]{0}', space=vmem, size = 0x400, scoped, tag = 'output window, operand 2']
    #allocation11 [shape = 'u8[1024]{0}', space=vmem, size = 0x400, scoped, tag = 'output window, operand 3']
    #allocation12 [shape = 's32[2]{0}', space=sflag, size = 0x8, scoped, tag = 'scoped memory for tpu_custom_call.1']
    %19 = vsyncpa [#allocation3], 0
    %20 = vsyncpa [#allocation6], 0
    %21 = vsyncpa [#allocation4], 0
    %s22 = scalar_lea.sflag [#allocation4], 1
    %23 = vsyncpa %s22, 0
    %24 = vsyncpa [#allocation9], 0
    %s25 = scalar_lea.sflag [#allocation9], 1
    %26 = vsyncpa %s25, 0
    %27 = vsyncpa [#allocation12], 0
    %s28 = scalar_lea.sflag [#allocation12], 1
    %29 = vsyncpa %s28, 0
    loop: start=0, step=1, limit=4
    $region2: #{tpu_custom_call.1} parent=1 // loop_pre_header
      _
    $region3: #{tpu_custom_call.1} parent=1 // loop_header
      %s31 = sphi 0, %s35
      %p32 = scmp.ge.s32.totalorder %s31, 4
      %s41 = sphi 0, %s43
      %s44 = sphi 0, %s41
      %s45 = sphi 0, %s44
      %s61 = sphi 0, %s45
      %s67 = sphi 0, %s69
      %s70 = sphi 0, %s67
      %s71 = sphi 0, %s70
      %s87 = sphi 0, %s71
      %s93 = sphi 0, %s95
      %s96 = sphi 0, %s93
      %s97 = sphi 0, %s96
      %s113 = sphi 0, %s97
      %s119 = sphi 0, %s121
      %s122 = sphi 0, %s119
      %s123 = sphi 0, %s122
      %s139 = sphi 0, %s123
      %s143 = sphi 0, %s143
      %s145 = sphi 0, %s143
      %s146 = sphi 0, %s145
      %s160 = sphi 0, %s146
      %s164 = sphi 0, %s164
      %s166 = sphi 0, %s164
      %s167 = sphi 0, %s166
      %s181 = sphi 0, %s167
      %s185 = sphi 0, %s185
      %s187 = sphi 0, %s185
      %s188 = sphi 0, %s187
      %s202 = sphi 0, %s188
      %s206 = sphi 0, %s206
      %s208 = sphi 0, %s206
      %s209 = sphi 0, %s208
      %s223 = sphi 0, %s209
      %s227 = sphi 0, %s227
      %s229 = sphi 0, %s227
      %s230 = sphi 0, %s229
      %s244 = sphi 0, %s230
      %s248 = sphi 0, %s248
      %s250 = sphi 0, %s248
      %s251 = sphi 0, %s250
      %s265 = sphi 0, %s251
      %s271 = sphi 0, %s273
      %s274 = sphi 0, %s271
      %s275 = sphi 0, %s274
      %s291 = sphi 0, %s275
      %s297 = sphi 0, %s299
      %s300 = sphi 0, %s297
      %s301 = sphi 0, %s300
      %s317 = sphi 0, %s301
      %s323 = sphi 0, %s325
      %s326 = sphi 0, %s323
      %s327 = sphi 0, %s326
      %s343 = sphi 0, %s327
      %s349 = sphi 0, %s351
      %s352 = sphi 0, %s349
      %s353 = sphi 0, %s352
      %s369 = sphi 0, %s353
    $region4: #{tpu_custom_call.1} parent=1 // loop_header_branch
      %34 = sbr.rel (%p32) target = $region8
    $region5: #{tpu_custom_call.1} parent=1 // loop_body
      %s36 = ssub.s32 %s31, 1
      %s37 = ssub.s32 %s31, 2
      %s38 = sadd.s32 %s31, 1
      %s39 = ssub.s32 %s31, %s38
      %p40 = scmp.eq.s32.totalorder %s39, 0
      %s42 = sadd.s32 %s41, 1
      %s43 = scalar_select %p40, %s41, %s42
      %p46 = pneg %p40
      %p47 = scmp.eq.s32.totalorder %s31, 1
      %p48 = por %p46, %p47
      %p49 = scmp.ne.s32.totalorder %s41, %s44
      %p50 = scmp.eq.s32.totalorder %s31, 0
      %p51 = por %p49, %p50
      %p52 = scmp.ne.s32.totalorder %s41, %s44
      %p53 = scmp.eq.s32.totalorder %s36, 1
      %p54 = por %p52, %p53
      %p55 = scmp.ne.s32.totalorder %s44, %s45
      %p56 = scmp.eq.s32.totalorder %s36, 0
      %p57 = por %p55, %p56
      %p58 = scmp.ne.s32.totalorder %s44, %s45
      %p59 = scmp.eq.s32.totalorder %s37, 1
      %p60 = por %p58, %p59
      %p62 = scmp.ne.s32.totalorder %s45, %s61
      %p63 = scmp.eq.s32.totalorder %s37, 0
      %p64 = por %p62, %p63
      %s65 = ssub.s32 %s31, %s38
      %p66 = scmp.eq.s32.totalorder %s65, 0
      %s68 = sadd.s32 %s67, 1
      %s69 = scalar_select %p66, %s67, %s68
      %p72 = pneg %p66
      %p73 = scmp.eq.s32.totalorder %s31, 1
      %p74 = por %p72, %p73
      %p75 = scmp.ne.s32.totalorder %s67, %s70
      %p76 = scmp.eq.s32.totalorder %s31, 0
      %p77 = por %p75, %p76
      %p78 = scmp.ne.s32.totalorder %s67, %s70
      %p79 = scmp.eq.s32.totalorder %s36, 1
      %p80 = por %p78, %p79
      %p81 = scmp.ne.s32.totalorder %s70, %s71
      %p82 = scmp.eq.s32.totalorder %s36, 0
      %p83 = por %p81, %p82
      %p84 = scmp.ne.s32.totalorder %s70, %s71
      %p85 = scmp.eq.s32.totalorder %s37, 1
      %p86 = por %p84, %p85
      %p88 = scmp.ne.s32.totalorder %s71, %s87
      %p89 = scmp.eq.s32.totalorder %s37, 0
      %p90 = por %p88, %p89
      %s91 = ssub.s32 %s31, %s38
      %p92 = scmp.eq.s32.totalorder %s91, 0
      %s94 = sadd.s32 %s93, 1
      %s95 = scalar_select %p92, %s93, %s94
      %p98 = pneg %p92
      %p99 = scmp.eq.s32.totalorder %s31, 1
      %p100 = por %p98, %p99
      %p101 = scmp.ne.s32.totalorder %s93, %s96
      %p102 = scmp.eq.s32.totalorder %s31, 0
      %p103 = por %p101, %p102
      %p104 = scmp.ne.s32.totalorder %s93, %s96
      %p105 = scmp.eq.s32.totalorder %s36, 1
      %p106 = por %p104, %p105
      %p107 = scmp.ne.s32.totalorder %s96, %s97
      %p108 = scmp.eq.s32.totalorder %s36, 0
      %p109 = por %p107, %p108
      %p110 = scmp.ne.s32.totalorder %s96, %s97
      %p111 = scmp.eq.s32.totalorder %s37, 1
      %p112 = por %p110, %p111
      %p114 = scmp.ne.s32.totalorder %s97, %s113
      %p115 = scmp.eq.s32.totalorder %s37, 0
      %p116 = por %p114, %p115
      %s117 = ssub.s32 %s31, %s38
      %p118 = scmp.eq.s32.totalorder %s117, 0
      %s120 = sadd.s32 %s119, 1
      %s121 = scalar_select %p118, %s119, %s120
      %p124 = pneg %p118
      %p125 = scmp.eq.s32.totalorder %s31, 1
      %p126 = por %p124, %p125
      %p127 = scmp.ne.s32.totalorder %s119, %s122
      %p128 = scmp.eq.s32.totalorder %s31, 0
      %p129 = por %p127, %p128
      %p130 = scmp.ne.s32.totalorder %s119, %s122
      %p131 = scmp.eq.s32.totalorder %s36, 1
      %p132 = por %p130, %p131
      %p133 = scmp.ne.s32.totalorder %s122, %s123
      %p134 = scmp.eq.s32.totalorder %s36, 0
      %p135 = por %p133, %p134
      %p136 = scmp.ne.s32.totalorder %s122, %s123
      %p137 = scmp.eq.s32.totalorder %s37, 1
      %p138 = por %p136, %p137
      %p140 = scmp.ne.s32.totalorder %s123, %s139
      %p141 = scmp.eq.s32.totalorder %s37, 0
      %p142 = por %p140, %p141
      %s144 = sadd.s32 %s143, 1
      %p147 = scmp.eq.s32.totalorder %s31, 1
      %p148 = scmp.ne.s32.totalorder %s143, %s145
      %p149 = scmp.eq.s32.totalorder %s31, 0
      %p150 = por %p148, %p149
      %p151 = scmp.ne.s32.totalorder %s143, %s145
      %p152 = scmp.eq.s32.totalorder %s36, 1
      %p153 = por %p151, %p152
      %p154 = scmp.ne.s32.totalorder %s145, %s146
      %p155 = scmp.eq.s32.totalorder %s36, 0
      %p156 = por %p154, %p155
      %p157 = scmp.ne.s32.totalorder %s145, %s146
      %p158 = scmp.eq.s32.totalorder %s37, 1
      %p159 = por %p157, %p158
      %p161 = scmp.ne.s32.totalorder %s146, %s160
      %p162 = scmp.eq.s32.totalorder %s37, 0
      %p163 = por %p161, %p162
      %s165 = sadd.s32 %s164, 1
      %p168 = scmp.eq.s32.totalorder %s31, 1
      %p169 = scmp.ne.s32.totalorder %s164, %s166
      %p170 = scmp.eq.s32.totalorder %s31, 0
      %p171 = por %p169, %p170
      %p172 = scmp.ne.s32.totalorder %s164, %s166
      %p173 = scmp.eq.s32.totalorder %s36, 1
      %p174 = por %p172, %p173
      %p175 = scmp.ne.s32.totalorder %s166, %s167
      %p176 = scmp.eq.s32.totalorder %s36, 0
      %p177 = por %p175, %p176
      %p178 = scmp.ne.s32.totalorder %s166, %s167
      %p179 = scmp.eq.s32.totalorder %s37, 1
      %p180 = por %p178, %p179
      %p182 = scmp.ne.s32.totalorder %s167, %s181
      %p183 = scmp.eq.s32.totalorder %s37, 0
      %p184 = por %p182, %p183
      %s186 = sadd.s32 %s185, 1
      %p189 = scmp.eq.s32.totalorder %s31, 1
      %p190 = scmp.ne.s32.totalorder %s185, %s187
      %p191 = scmp.eq.s32.totalorder %s31, 0
      %p192 = por %p190, %p191
      %p193 = scmp.ne.s32.totalorder %s185, %s187
      %p194 = scmp.eq.s32.totalorder %s36, 1
      %p195 = por %p193, %p194
      %p196 = scmp.ne.s32.totalorder %s187, %s188
      %p197 = scmp.eq.s32.totalorder %s36, 0
      %p198 = por %p196, %p197
      %p199 = scmp.ne.s32.totalorder %s187, %s188
      %p200 = scmp.eq.s32.totalorder %s37, 1
      %p201 = por %p199, %p200
      %p203 = scmp.ne.s32.totalorder %s188, %s202
      %p204 = scmp.eq.s32.totalorder %s37, 0
      %p205 = por %p203, %p204
      %s207 = sadd.s32 %s206, 1
      %p210 = scmp.eq.s32.totalorder %s31, 1
      %p211 = scmp.ne.s32.totalorder %s206, %s208
      %p212 = scmp.eq.s32.totalorder %s31, 0
      %p213 = por %p211, %p212
      %p214 = scmp.ne.s32.totalorder %s206, %s208
      %p215 = scmp.eq.s32.totalorder %s36, 1
      %p216 = por %p214, %p215
      %p217 = scmp.ne.s32.totalorder %s208, %s209
      %p218 = scmp.eq.s32.totalorder %s36, 0
      %p219 = por %p217, %p218
      %p220 = scmp.ne.s32.totalorder %s208, %s209
      %p221 = scmp.eq.s32.totalorder %s37, 1
      %p222 = por %p220, %p221
      %p224 = scmp.ne.s32.totalorder %s209, %s223
      %p225 = scmp.eq.s32.totalorder %s37, 0
      %p226 = por %p224, %p225
      %s228 = sadd.s32 %s227, 1
      %p231 = scmp.eq.s32.totalorder %s31, 1
      %p232 = scmp.ne.s32.totalorder %s227, %s229
      %p233 = scmp.eq.s32.totalorder %s31, 0
      %p234 = por %p232, %p233
      %p235 = scmp.ne.s32.totalorder %s227, %s229
      %p236 = scmp.eq.s32.totalorder %s36, 1
      %p237 = por %p235, %p236
      %p238 = scmp.ne.s32.totalorder %s229, %s230
      %p239 = scmp.eq.s32.totalorder %s36, 0
      %p240 = por %p238, %p239
      %p241 = scmp.ne.s32.totalorder %s229, %s230
      %p242 = scmp.eq.s32.totalorder %s37, 1
      %p243 = por %p241, %p242
      %p245 = scmp.ne.s32.totalorder %s230, %s244
      %p246 = scmp.eq.s32.totalorder %s37, 0
      %p247 = por %p245, %p246
      %s249 = sadd.s32 %s248, 1
      %p252 = scmp.eq.s32.totalorder %s31, 1
      %p253 = scmp.ne.s32.totalorder %s248, %s250
      %p254 = scmp.eq.s32.totalorder %s31, 0
      %p255 = por %p253, %p254
      %p256 = scmp.ne.s32.totalorder %s248, %s250
      %p257 = scmp.eq.s32.totalorder %s36, 1
      %p258 = por %p256, %p257
      %p259 = scmp.ne.s32.totalorder %s250, %s251
      %p260 = scmp.eq.s32.totalorder %s36, 0
      %p261 = por %p259, %p260
      %p262 = scmp.ne.s32.totalorder %s250, %s251
      %p263 = scmp.eq.s32.totalorder %s37, 1
      %p264 = por %p262, %p263
      %p266 = scmp.ne.s32.totalorder %s251, %s265
      %p267 = scmp.eq.s32.totalorder %s37, 0
      %p268 = por %p266, %p267
      %s269 = ssub.s32 %s31, %s38
      %p270 = scmp.eq.s32.totalorder %s269, 0
      %s272 = sadd.s32 %s271, 1
      %s273 = scalar_select %p270, %s271, %s272
      %p276 = pneg %p270
      %p277 = scmp.eq.s32.totalorder %s31, 1
      %p278 = por %p276, %p277
      %p279 = scmp.ne.s32.totalorder %s271, %s274
      %p280 = scmp.eq.s32.totalorder %s31, 0
      %p281 = por %p279, %p280
      %p282 = scmp.ne.s32.totalorder %s271, %s274
      %p283 = scmp.eq.s32.totalorder %s36, 1
      %p284 = por %p282, %p283
      %p285 = scmp.ne.s32.totalorder %s274, %s275
      %p286 = scmp.eq.s32.totalorder %s36, 0
      %p287 = por %p285, %p286
      %p288 = scmp.ne.s32.totalorder %s274, %s275
      %p289 = scmp.eq.s32.totalorder %s37, 1
      %p290 = por %p288, %p289
      %p292 = scmp.ne.s32.totalorder %s275, %s291
      %p293 = scmp.eq.s32.totalorder %s37, 0
      %p294 = por %p292, %p293
      %s295 = ssub.s32 %s31, %s38
      %p296 = scmp.eq.s32.totalorder %s295, 0
      %s298 = sadd.s32 %s297, 1
      %s299 = scalar_select %p296, %s297, %s298
      %p302 = pneg %p296
      %p303 = scmp.eq.s32.totalorder %s31, 1
      %p304 = por %p302, %p303
      %p305 = scmp.ne.s32.totalorder %s297, %s300
      %p306 = scmp.eq.s32.totalorder %s31, 0
      %p307 = por %p305, %p306
      %p308 = scmp.ne.s32.totalorder %s297, %s300
      %p309 = scmp.eq.s32.totalorder %s36, 1
      %p310 = por %p308, %p309
      %p311 = scmp.ne.s32.totalorder %s300, %s301
      %p312 = scmp.eq.s32.totalorder %s36, 0
      %p313 = por %p311, %p312
      %p314 = scmp.ne.s32.totalorder %s300, %s301
      %p315 = scmp.eq.s32.totalorder %s37, 1
      %p316 = por %p314, %p315
      %p318 = scmp.ne.s32.totalorder %s301, %s317
      %p319 = scmp.eq.s32.totalorder %s37, 0
      %p320 = por %p318, %p319
      %s321 = ssub.s32 %s31, %s38
      %p322 = scmp.eq.s32.totalorder %s321, 0
      %s324 = sadd.s32 %s323, 1
      %s325 = scalar_select %p322, %s323, %s324
      %p328 = pneg %p322
      %p329 = scmp.eq.s32.totalorder %s31, 1
      %p330 = por %p328, %p329
      %p331 = scmp.ne.s32.totalorder %s323, %s326
      %p332 = scmp.eq.s32.totalorder %s31, 0
      %p333 = por %p331, %p332
      %p334 = scmp.ne.s32.totalorder %s323, %s326
      %p335 = scmp.eq.s32.totalorder %s36, 1
      %p336 = por %p334, %p335
      %p337 = scmp.ne.s32.totalorder %s326, %s327
      %p338 = scmp.eq.s32.totalorder %s36, 0
      %p339 = por %p337, %p338
      %p340 = scmp.ne.s32.totalorder %s326, %s327
      %p341 = scmp.eq.s32.totalorder %s37, 1
      %p342 = por %p340, %p341
      %p344 = scmp.ne.s32.totalorder %s327, %s343
      %p345 = scmp.eq.s32.totalorder %s37, 0
      %p346 = por %p344, %p345
      %s347 = ssub.s32 %s31, %s38
      %p348 = scmp.eq.s32.totalorder %s347, 0
      %s350 = sadd.s32 %s349, 1
      %s351 = scalar_select %p348, %s349, %s350
      %p354 = pneg %p348
      %p355 = scmp.eq.s32.totalorder %s31, 1
      %p356 = por %p354, %p355
      %p357 = scmp.ne.s32.totalorder %s349, %s352
      %p358 = scmp.eq.s32.totalorder %s31, 0
      %p359 = por %p357, %p358
      %p360 = scmp.ne.s32.totalorder %s349, %s352
      %p361 = scmp.eq.s32.totalorder %s36, 1
      %p362 = por %p360, %p361
      %p363 = scmp.ne.s32.totalorder %s352, %s353
      %p364 = scmp.eq.s32.totalorder %s36, 0
      %p365 = por %p363, %p364
      %p366 = scmp.ne.s32.totalorder %s352, %s353
      %p367 = scmp.eq.s32.totalorder %s37, 1
      %p368 = por %p366, %p367
      %p370 = scmp.ne.s32.totalorder %s353, %s369
      %p371 = scmp.eq.s32.totalorder %s37, 0
      %p372 = por %p370, %p371
      %p373 = scmp.le.s32.totalorder 1, %s31
      %p374 = scmp.lt.s32.totalorder %s31, 3
      %p375 = pnand %p373, %p374
      %p376 = pneg %p375
      // Predicated region
      $region9: #{tpu_custom_call.1} parent=5 // pred_check
        _
      $region10: #{tpu_custom_call.1} parent=5 // pred_check_branch
        %378 = sbr.rel (%p375) target = $region12
      $region11: #{tpu_custom_call.1} parent=5 // pred_region
        %s379 = ssub.s32 %s31, 1
        // Predicated region
        $region13: #{tpu_custom_call.1} parent=11 // pred_check
          %p380 = pneg %p156
        $region14: #{tpu_custom_call.1} parent=11 // pred_check_branch
          %382 = sbr.rel (%p380) target = $region16
        $region15: #{tpu_custom_call.1} parent=11 // pred_region
          _
        $region16: #{tpu_custom_call.1} parent=11 // pred_fallthru
          _
        // Predicated region
        $region17: #{tpu_custom_call.1} parent=11 // pred_check
          %p383 = pneg %p177
        $region18: #{tpu_custom_call.1} parent=11 // pred_check_branch
          %385 = sbr.rel (%p383) target = $region20
        $region19: #{tpu_custom_call.1} parent=11 // pred_region
          _
        $region20: #{tpu_custom_call.1} parent=11 // pred_fallthru
          _
        // Predicated region
        $region21: #{tpu_custom_call.1} parent=11 // pred_check
          %p386 = pneg %p198
        $region22: #{tpu_custom_call.1} parent=11 // pred_check_branch
          %388 = sbr.rel (%p386) target = $region24
        $region23: #{tpu_custom_call.1} parent=11 // pred_region
          %s390 = ssub.s32 256, 256
          %391 = vsyncadd [#allocation3], %s390
          %s392 = sshll.u32 [#allocation2], 4
          %s393 = int_to_ptr.vmem [resolvable:$true] %s392
          %398 = dma.hbm_to_vmem [thread:$0]  %s6, 256, %s393, [#allocation3], 64, 64, 4
        $region24: #{tpu_custom_call.1} parent=11 // pred_fallthru
          _
        // Predicated region
        $region25: #{tpu_custom_call.1} parent=11 // pred_check
          %p399 = pneg %p219
        $region26: #{tpu_custom_call.1} parent=11 // pred_check_branch
          %401 = sbr.rel (%p399) target = $region28
        $region27: #{tpu_custom_call.1} parent=11 // pred_region
          %s403 = ssub.s32 256, 256
          %404 = vsyncadd [#allocation6], %s403
          %s405 = sshll.u32 [#allocation5], 4
          %s406 = int_to_ptr.vmem [resolvable:$true] %s405
          %411 = dma.hbm_to_vmem [thread:$0]  %s7, 256, %s406, [#allocation6], 64, 64, 4
        $region28: #{tpu_custom_call.1} parent=11 // pred_fallthru
          _
        // Predicated region
        $region29: #{tpu_custom_call.1} parent=11 // pred_check
          %p412 = pneg %p240
        $region30: #{tpu_custom_call.1} parent=11 // pred_check_branch
          %414 = sbr.rel (%p412) target = $region32
        $region31: #{tpu_custom_call.1} parent=11 // pred_region
          _
        $region32: #{tpu_custom_call.1} parent=11 // pred_fallthru
          _
        // Predicated region
        $region33: #{tpu_custom_call.1} parent=11 // pred_check
          %p415 = pneg %p261
        $region34: #{tpu_custom_call.1} parent=11 // pred_check_branch
          %417 = sbr.rel (%p415) target = $region36
        $region35: #{tpu_custom_call.1} parent=11 // pred_region
          _
        $region36: #{tpu_custom_call.1} parent=11 // pred_fallthru
          _
      $region12: #{tpu_custom_call.1} parent=5 // pred_fallthru
        _
      %p418 = scmp.lt.s32.totalorder %s31, 2
      // Predicated region
      $region37: #{tpu_custom_call.1} parent=5 // pred_check
        %p419 = pneg %p418
      $region38: #{tpu_custom_call.1} parent=5 // pred_check_branch
        %421 = sbr.rel (%p419) target = $region40
      $region39: #{tpu_custom_call.1} parent=5 // pred_region
        // Predicated region
        $region41: #{tpu_custom_call.1} parent=39 // pred_check
          %p422 = pneg %p51
        $region42: #{tpu_custom_call.1} parent=39 // pred_check_branch
          %424 = sbr.rel (%p422) target = $region44
        $region43: #{tpu_custom_call.1} parent=39 // pred_region
          %p425 = scmp.lt.s32.totalorder %s31, 1
          %s426 = scalar_select %p425, %s31, 1
          %s427 = scalar_lea.vmem %s0, %s426
        $region44: #{tpu_custom_call.1} parent=39 // pred_fallthru
          _
        // Predicated region
        $region45: #{tpu_custom_call.1} parent=39 // pred_check
          %p428 = pneg %p77
        $region46: #{tpu_custom_call.1} parent=39 // pred_check_branch
          %430 = sbr.rel (%p428) target = $region48
        $region47: #{tpu_custom_call.1} parent=39 // pred_region
          %p431 = scmp.lt.s32.totalorder %s31, 1
          %s432 = scalar_select %p431, %s31, 1
          %s433 = scalar_lea.vmem %s1, %s432
        $region48: #{tpu_custom_call.1} parent=39 // pred_fallthru
          _
        // Predicated region
        $region49: #{tpu_custom_call.1} parent=39 // pred_check
          %p434 = pneg %p103
        $region50: #{tpu_custom_call.1} parent=39 // pred_check_branch
          %436 = sbr.rel (%p434) target = $region52
        $region51: #{tpu_custom_call.1} parent=39 // pred_region
          %p437 = scmp.lt.s32.totalorder %s31, 1
          %s438 = scalar_select %p437, %s31, 1
          %s439 = scalar_lea.vmem %s2, %s438
        $region52: #{tpu_custom_call.1} parent=39 // pred_fallthru
          _
        // Predicated region
        $region53: #{tpu_custom_call.1} parent=39 // pred_check
          %p440 = pneg %p129
        $region54: #{tpu_custom_call.1} parent=39 // pred_check_branch
          %442 = sbr.rel (%p440) target = $region56
        $region55: #{tpu_custom_call.1} parent=39 // pred_region
          %p443 = scmp.lt.s32.totalorder %s31, 1
          %s444 = scalar_select %p443, %s31, 1
          %s445 = scalar_lea.vmem %s3, %s444
        $region56: #{tpu_custom_call.1} parent=39 // pred_fallthru
          _
      $region40: #{tpu_custom_call.1} parent=5 // pred_fallthru
        _
      %p446 = scmp.le.s32.totalorder 1, %s31
      %p447 = scmp.lt.s32.totalorder %s31, 3
      %p448 = pnand %p446, %p447
      %p449 = pneg %p448
      // Predicated region
      $region57: #{tpu_custom_call.1} parent=5 // pred_check
        _
      $region58: #{tpu_custom_call.1} parent=5 // pred_check_branch
        %451 = sbr.rel (%p448) target = $region60
      $region59: #{tpu_custom_call.1} parent=5 // pred_region
        %s452 = ssub.s32 %s31, 1
        // Predicated region
        $region61: #{tpu_custom_call.1} parent=59 // pred_check
          %p453 = pneg %p198
        $region62: #{tpu_custom_call.1} parent=59 // pred_check_branch
          %455 = sbr.rel (%p453) target = $region64
        $region63: #{tpu_custom_call.1} parent=59 // pred_region
          %456 = dma.done [#allocation3], 256
        $region64: #{tpu_custom_call.1} parent=59 // pred_fallthru
          _
        // Predicated region
        $region65: #{tpu_custom_call.1} parent=59 // pred_check
          %p457 = pneg %p219
        $region66: #{tpu_custom_call.1} parent=59 // pred_check_branch
          %459 = sbr.rel (%p457) target = $region68
        $region67: #{tpu_custom_call.1} parent=59 // pred_region
          %460 = dma.done [#allocation6], 256
        $region68: #{tpu_custom_call.1} parent=59 // pred_fallthru
          _
        %p461 = scmp.lt.s32.totalorder %s36, 1
        %s462 = scalar_select %p461, %s36, 1
        %s463 = scalar_lea.vmem %s0, %s462
        %p464 = pneg %p57
        %p465 = pneg %p54
        %p466 = scmp.lt.s32.totalorder %s36, 1
        %s467 = scalar_select %p466, %s36, 1
        %s468 = scalar_lea.vmem %s1, %s467
        %p469 = pneg %p83
        %p470 = pneg %p80
        %p471 = scmp.lt.s32.totalorder %s36, 1
        %s472 = scalar_select %p471, %s36, 1
        %s473 = scalar_lea.vmem %s2, %s472
        %p474 = pneg %p109
        %p475 = pneg %p106
        %p476 = scmp.lt.s32.totalorder %s36, 1
        %s477 = scalar_select %p476, %s36, 1
        %s478 = scalar_lea.vmem %s3, %s477
        %p479 = pneg %p135
        %p480 = pneg %p132
        %p481 = pneg %p156
        %p482 = pneg %p153
        %p483 = pneg %p177
        %p484 = pneg %p174
        %p485 = pneg %p198
        %p486 = pneg %p195
        %p487 = pneg %p219
        %p488 = pneg %p216
        %p489 = pneg %p240
        %p490 = pneg %p237
        %p491 = pneg %p261
        %p492 = pneg %p258
        %p493 = pneg %p287
        %p494 = pneg %p284
        %s495 = sand.u32 %s274, 1
        %s496 = scalar_lea.sflag [#allocation4], %s495
        %s497 = sand.u32 %s274, 1
        %s498 = scalar_lea.vmem [#allocation7], %s497
        %p499 = pneg %p313
        %p500 = pneg %p310
        %s501 = sand.u32 %s36, 1
        %s502 = scalar_lea.sflag [#allocation9], %s501
        %s503 = sand.u32 %s300, 1
        %s504 = scalar_lea.vmem [#allocation8], %s503
        %p505 = pneg %p339
        %p506 = pneg %p336
        %s507 = sand.u32 %s36, 1
        %s508 = scalar_lea.sflag [#allocation9], %s507
        %s509 = sand.u32 %s326, 1
        %s510 = scalar_lea.vmem [#allocation10], %s509
        %p511 = pneg %p365
        %p512 = pneg %p362
        %s513 = sand.u32 %s352, 1
        %s514 = scalar_lea.sflag [#allocation12], %s513
        %s515 = sand.u32 %s352, 1
        %s516 = scalar_lea.vmem [#allocation11], %s515
        %p517 = scmp.lt.s32.totalorder %s36, 1
        %s518 = scalar_select %p517, %s36, 1
        %s519 = scalar_lea.vmem %s0, %s518
        %p520 = scmp.lt.s32.totalorder %s36, 1
        %s521 = scalar_select %p520, %s36, 1
        %s522 = scalar_lea.vmem %s1, %s521
        %p523 = scmp.lt.s32.totalorder %s36, 1
        %s524 = scalar_select %p523, %s36, 1
        %s525 = scalar_lea.vmem %s2, %s524
        %p526 = scmp.lt.s32.totalorder %s36, 1
        %s527 = scalar_select %p526, %s36, 1
        %s528 = scalar_lea.vmem %s3, %s527
        %v530 = vld [vmem:[%s519] sm:$0x1]
        %v531 = vld [vmem:[%s4] sm:$0xf]
        %v532 = vld [vmem:[%s4 + $0x4] sm:$0xf]
        %v533 = vld [vmem:[%s4 + $0x8] sm:$0xf]
        %v534 = vld [vmem:[%s4 + $0xc] sm:$0xf]
        %v535 = vld [vmem:[%s8] sm:$0x1]
        %v540 = vunpack.c.l.b16 %v531
        %v541 = vunpack.c.l.b16 %v532
        %v542 = vunpack.c.l.b16 %v533
        %v543 = vunpack.c.l.b16 %v534
        %v544 = vpack.c.b16 %v541, %v540
        %v545 = vpack.c.b16 %v543, %v542
        %vm548 = vcmask 261120
        %v550 = vsel %vm548, %v530, 0
        %552 = vmatprep.subr.bf16.mxu0 0
        %553 = vmatpush1.bf16.msra.mxu0 %v544
        %554 = vmatprep.subr.bf16.mxu0 0
        %555 = vmatpush1.bf16.msra.mxu0 %v545
        %556 = vmatprep.subr.bf16.mxu0 0
        %557 = vmatpush1.bf16.msra.mxu0 0
        %558 = vmatprep.subr.bf16.mxu0 0
        %559 = vmatpush1.bf16.msra.mxu0 0
        %560 = vmatprep.subr.bf16.mxu0 0
        %561 = vmatpush1.bf16.msra.mxu0 0
        %562 = vmatprep.subr.bf16.mxu0 0
        %563 = vmatpush1.bf16.msra.mxu0 0
        %564 = vmatprep.subr.bf16.mxu0 0
        %565 = vmatpush1.bf16.msra.mxu0 0
        %566 = vmatprep.subr.bf16.mxu0 0
        %567 = vmatpush1.bf16.msra.mxu0 0
        %568 = vmatprep.subr.bf16.mxu0 0
        %569 = vmatpush1.bf16.msra.mxu0 0
        %570 = vmatprep.subr.bf16.mxu0 0
        %571 = vmatpush1.bf16.msra.mxu0 0
        %572 = vmatprep.subr.bf16.mxu0 0
        %573 = vmatpush1.bf16.msra.mxu0 0
        %574 = vmatprep.subr.bf16.mxu0 0
        %575 = vmatpush1.bf16.msra.mxu0 0
        %576 = vmatprep.subr.bf16.mxu0 0
        %577 = vmatpush1.bf16.msra.mxu0 0
        %578 = vmatprep.subr.bf16.mxu0 0
        %579 = vmatpush1.bf16.msra.mxu0 0
        %580 = vmatprep.subr.bf16.mxu0 0
        %581 = vmatpush1.bf16.msra.mxu0 0
        %582 = vmatprep.subr.bf16.mxu0 0
        %583 = vmatpush1.bf16.msra.mxu0 0
        %584 = vmatprep.mubr.bf16.mxu0 0
        %585 = vmatmul.mubr.bf16.gmra.mrb[0].mxu0 %v550
        %v586 = vpop.f32.mrb[0].mxu0
        %v587 = vadd.f32 %v535, %v586
        %v588 = vpop.f32.mrb[0].mxu0
        %v589 = vpop.f32.mrb[0].mxu0
        %v590 = vpop.f32.mrb[0].mxu0
        %591 = vdwg.mxu0
        %v592 = vld [vmem:[%s522] sm:$0x1]
        %v593 = vld [vmem:[#allocation2] sm:$0xf]
        %v594 = vld [vmem:[#allocation2 + $0x4] sm:$0xf]
        %v595 = vld [vmem:[#allocation2 + $0x8] sm:$0xf]
        %v596 = vld [vmem:[#allocation2 + $0xc] sm:$0xf]
        %v597 = vld [vmem:[%s9] sm:$0x1]
        %v602 = vunpack.c.l.b16 %v593
        %v603 = vunpack.c.l.b16 %v594
        %v604 = vunpack.c.l.b16 %v595
        %v605 = vunpack.c.l.b16 %v596
        %v606 = vpack.c.b16 %v603, %v602
        %v607 = vpack.c.b16 %v605, %v604
        %v611 = vsel %vm548, %v592, 0
        %613 = vmatprep.subr.bf16.mxu0 0
        %614 = vmatpush1.bf16.msra.mxu0 %v606
        %615 = vmatprep.subr.bf16.mxu0 0
        %616 = vmatpush1.bf16.msra.mxu0 %v607
        %617 = vmatprep.subr.bf16.mxu0 0
        %618 = vmatpush1.bf16.msra.mxu0 0
        %619 = vmatprep.subr.bf16.mxu0 0
        %620 = vmatpush1.bf16.msra.mxu0 0
        %621 = vmatprep.subr.bf16.mxu0 0
        %622 = vmatpush1.bf16.msra.mxu0 0
        %623 = vmatprep.subr.bf16.mxu0 0
        %624 = vmatpush1.bf16.msra.mxu0 0
        %625 = vmatprep.subr.bf16.mxu0 0
        %626 = vmatpush1.bf16.msra.mxu0 0
        %627 = vmatprep.subr.bf16.mxu0 0
        %628 = vmatpush1.bf16.msra.mxu0 0
        %629 = vmatprep.subr.bf16.mxu0 0
        %630 = vmatpush1.bf16.msra.mxu0 0
        %631 = vmatprep.subr.bf16.mxu0 0
        %632 = vmatpush1.bf16.msra.mxu0 0
        %633 = vmatprep.subr.bf16.mxu0 0
        %634 = vmatpush1.bf16.msra.mxu0 0
        %635 = vmatprep.subr.bf16.mxu0 0
        %636 = vmatpush1.bf16.msra.mxu0 0
        %637 = vmatprep.subr.bf16.mxu0 0
        %638 = vmatpush1.bf16.msra.mxu0 0
        %639 = vmatprep.subr.bf16.mxu0 0
        %640 = vmatpush1.bf16.msra.mxu0 0
        %641 = vmatprep.subr.bf16.mxu0 0
        %642 = vmatpush1.bf16.msra.mxu0 0
        %643 = vmatprep.subr.bf16.mxu0 0
        %644 = vmatpush1.bf16.msra.mxu0 0
        %645 = vmatprep.mubr.bf16.mxu0 0
        %646 = vmatmul.mubr.bf16.gmra.mrb[0].mxu0 %v611
        %v647 = vpop.f32.mrb[0].mxu0
        %v648 = vadd.f32 %v597, %v647
        %v649 = vpop.f32.mrb[0].mxu0
        %v650 = vpop.f32.mrb[0].mxu0
        %v651 = vpop.f32.mrb[0].mxu0
        %652 = vdwg.mxu0
        %v653 = vld [vmem:[%s525] sm:$0x1]
        %v654 = vld [vmem:[%s5] sm:$0xf]
        %v655 = vld [vmem:[%s5 + $0x4] sm:$0xf]
        %v656 = vld [vmem:[%s5 + $0x8] sm:$0xf]
        %v657 = vld [vmem:[%s5 + $0xc] sm:$0xf]
        %v662 = vunpack.c.l.b16 %v654
        %v663 = vunpack.c.l.b16 %v655
        %v664 = vunpack.c.l.b16 %v656
        %v665 = vunpack.c.l.b16 %v657
        %v666 = vpack.c.b16 %v663, %v662
        %v667 = vpack.c.b16 %v665, %v664
        %v671 = vsel %vm548, %v653, 0
        %673 = vmatprep.subr.bf16.mxu0 0
        %674 = vmatpush1.bf16.msra.mxu0 %v666
        %675 = vmatprep.subr.bf16.mxu0 0
        %676 = vmatpush1.bf16.msra.mxu0 %v667
        %677 = vmatprep.subr.bf16.mxu0 0
        %678 = vmatpush1.bf16.msra.mxu0 0
        %679 = vmatprep.subr.bf16.mxu0 0
        %680 = vmatpush1.bf16.msra.mxu0 0
        %681 = vmatprep.subr.bf16.mxu0 0
        %682 = vmatpush1.bf16.msra.mxu0 0
        %683 = vmatprep.subr.bf16.mxu0 0
        %684 = vmatpush1.bf16.msra.mxu0 0
        %685 = vmatprep.subr.bf16.mxu0 0
        %686 = vmatpush1.bf16.msra.mxu0 0
        %687 = vmatprep.subr.bf16.mxu0 0
        %688 = vmatpush1.bf16.msra.mxu0 0
        %689 = vmatprep.subr.bf16.mxu0 0
        %690 = vmatpush1.bf16.msra.mxu0 0
        %691 = vmatprep.subr.bf16.mxu0 0
        %692 = vmatpush1.bf16.msra.mxu0 0
        %693 = vmatprep.subr.bf16.mxu0 0
        %694 = vmatpush1.bf16.msra.mxu0 0
        %695 = vmatprep.subr.bf16.mxu0 0
        %696 = vmatpush1.bf16.msra.mxu0 0
        %697 = vmatprep.subr.bf16.mxu0 0
        %698 = vmatpush1.bf16.msra.mxu0 0
        %699 = vmatprep.subr.bf16.mxu0 0
        %700 = vmatpush1.bf16.msra.mxu0 0
        %701 = vmatprep.subr.bf16.mxu0 0
        %702 = vmatpush1.bf16.msra.mxu0 0
        %703 = vmatprep.subr.bf16.mxu0 0
        %704 = vmatpush1.bf16.msra.mxu0 0
        %705 = vmatprep.mubr.bf16.mxu0 0
        %706 = vmatmul.mubr.bf16.gmra.mrb[0].mxu0 %v671
        %v707 = vpop.f32.mrb[0].mxu0
        %v708 = vadd.f32 0.0, %v707
        %v709 = vpop.f32.mrb[0].mxu0
        %v710 = vpop.f32.mrb[0].mxu0
        %v711 = vpop.f32.mrb[0].mxu0
        %712 = vdwg.mxu0
        %v713 = vld [vmem:[#allocation5] sm:$0xf]
        %v714 = vld [vmem:[#allocation5 + $0x4] sm:$0xf]
        %v715 = vld [vmem:[#allocation5 + $0x8] sm:$0xf]
        %v716 = vld [vmem:[#allocation5 + $0xc] sm:$0xf]
        %v721 = vunpack.c.l.b16 %v713
        %v722 = vunpack.c.l.b16 %v714
        %v723 = vunpack.c.l.b16 %v715
        %v724 = vunpack.c.l.b16 %v716
        %v725 = vpack.c.b16 %v722, %v721
        %v726 = vpack.c.b16 %v724, %v723
        %729 = vmatprep.subr.bf16.mxu0 0
        %730 = vmatpush1.bf16.msra.mxu0 %v725
        %731 = vmatprep.subr.bf16.mxu0 0
        %732 = vmatpush1.bf16.msra.mxu0 %v726
        %733 = vmatprep.subr.bf16.mxu0 0
        %734 = vmatpush1.bf16.msra.mxu0 0
        %735 = vmatprep.subr.bf16.mxu0 0
        %736 = vmatpush1.bf16.msra.mxu0 0
        %737 = vmatprep.subr.bf16.mxu0 0
        %738 = vmatpush1.bf16.msra.mxu0 0
        %739 = vmatprep.subr.bf16.mxu0 0
        %740 = vmatpush1.bf16.msra.mxu0 0
        %741 = vmatprep.subr.bf16.mxu0 0
        %742 = vmatpush1.bf16.msra.mxu0 0
        %743 = vmatprep.subr.bf16.mxu0 0
        %744 = vmatpush1.bf16.msra.mxu0 0
        %745 = vmatprep.subr.bf16.mxu0 0
        %746 = vmatpush1.bf16.msra.mxu0 0
        %747 = vmatprep.subr.bf16.mxu0 0
        %748 = vmatpush1.bf16.msra.mxu0 0
        %749 = vmatprep.subr.bf16.mxu0 0
        %750 = vmatpush1.bf16.msra.mxu0 0
        %751 = vmatprep.subr.bf16.mxu0 0
        %752 = vmatpush1.bf16.msra.mxu0 0
        %753 = vmatprep.subr.bf16.mxu0 0
        %754 = vmatpush1.bf16.msra.mxu0 0
        %755 = vmatprep.subr.bf16.mxu0 0
        %756 = vmatpush1.bf16.msra.mxu0 0
        %757 = vmatprep.subr.bf16.mxu0 0
        %758 = vmatpush1.bf16.msra.mxu0 0
        %759 = vmatprep.subr.bf16.mxu0 0
        %760 = vmatpush1.bf16.msra.mxu0 0
        %761 = vmatprep.mubr.bf16.mxu0 0
        %762 = vmatmul.mubr.bf16.gmra.mrb[0].mxu0 %v671
        %v763 = vpop.f32.mrb[0].mxu0
        %v764 = vadd.f32 0.0, %v763
        %v765 = vpop.f32.mrb[0].mxu0
        %v766 = vpop.f32.mrb[0].mxu0
        %v767 = vpop.f32.mrb[0].mxu0
        %768 = vdwg.mxu0
        %v769 = vld [vmem:[%s528] sm:$0x1]
        %v771 = vsel %vm548, %v769, 0
        %773 = vmatprep.subr.bf16.mxu0 0
        %774 = vmatpush1.bf16.msra.mxu0 %v666
        %775 = vmatprep.subr.bf16.mxu0 0
        %776 = vmatpush1.bf16.msra.mxu0 %v667
        %777 = vmatprep.subr.bf16.mxu0 0
        %778 = vmatpush1.bf16.msra.mxu0 0
        %779 = vmatprep.subr.bf16.mxu0 0
        %780 = vmatpush1.bf16.msra.mxu0 0
        %781 = vmatprep.subr.bf16.mxu0 0
        %782 = vmatpush1.bf16.msra.mxu0 0
        %783 = vmatprep.subr.bf16.mxu0 0
        %784 = vmatpush1.bf16.msra.mxu0 0
        %785 = vmatprep.subr.bf16.mxu0 0
        %786 = vmatpush1.bf16.msra.mxu0 0
        %787 = vmatprep.subr.bf16.mxu0 0
        %788 = vmatpush1.bf16.msra.mxu0 0
        %789 = vmatprep.subr.bf16.mxu0 0
        %790 = vmatpush1.bf16.msra.mxu0 0
        %791 = vmatprep.subr.bf16.mxu0 0
        %792 = vmatpush1.bf16.msra.mxu0 0
        %793 = vmatprep.subr.bf16.mxu0 0
        %794 = vmatpush1.bf16.msra.mxu0 0
        %795 = vmatprep.subr.bf16.mxu0 0
        %796 = vmatpush1.bf16.msra.mxu0 0
        %797 = vmatprep.subr.bf16.mxu0 0
        %798 = vmatpush1.bf16.msra.mxu0 0
        %799 = vmatprep.subr.bf16.mxu0 0
        %800 = vmatpush1.bf16.msra.mxu0 0
        %801 = vmatprep.subr.bf16.mxu0 0
        %802 = vmatpush1.bf16.msra.mxu0 0
        %803 = vmatprep.subr.bf16.mxu0 0
        %804 = vmatpush1.bf16.msra.mxu0 0
        %805 = vmatprep.mubr.bf16.mxu0 0
        %806 = vmatmul.mubr.bf16.gmra.mrb[0].mxu0 %v771
        %v807 = vpop.f32.mrb[0].mxu0
        %v808 = vadd.f32 0.0, %v807
        %v809 = vpop.f32.mrb[0].mxu0
        %v810 = vpop.f32.mrb[0].mxu0
        %v811 = vpop.f32.mrb[0].mxu0
        %812 = vdwg.mxu0
        %813 = vmatprep.subr.bf16.mxu0 0
        %814 = vmatpush1.bf16.msra.mxu0 %v725
        %815 = vmatprep.subr.bf16.mxu0 0
        %816 = vmatpush1.bf16.msra.mxu0 %v726
        %817 = vmatprep.subr.bf16.mxu0 0
        %818 = vmatpush1.bf16.msra.mxu0 0
        %819 = vmatprep.subr.bf16.mxu0 0
        %820 = vmatpush1.bf16.msra.mxu0 0
        %821 = vmatprep.subr.bf16.mxu0 0
        %822 = vmatpush1.bf16.msra.mxu0 0
        %823 = vmatprep.subr.bf16.mxu0 0
        %824 = vmatpush1.bf16.msra.mxu0 0
        %825 = vmatprep.subr.bf16.mxu0 0
        %826 = vmatpush1.bf16.msra.mxu0 0
        %827 = vmatprep.subr.bf16.mxu0 0
        %828 = vmatpush1.bf16.msra.mxu0 0
        %829 = vmatprep.subr.bf16.mxu0 0
        %830 = vmatpush1.bf16.msra.mxu0 0
        %831 = vmatprep.subr.bf16.mxu0 0
        %832 = vmatpush1.bf16.msra.mxu0 0
        %833 = vmatprep.subr.bf16.mxu0 0
        %834 = vmatpush1.bf16.msra.mxu0 0
        %835 = vmatprep.subr.bf16.mxu0 0
        %836 = vmatpush1.bf16.msra.mxu0 0
        %837 = vmatprep.subr.bf16.mxu0 0
        %838 = vmatpush1.bf16.msra.mxu0 0
        %839 = vmatprep.subr.bf16.mxu0 0
        %840 = vmatpush1.bf16.msra.mxu0 0
        %841 = vmatprep.subr.bf16.mxu0 0
        %842 = vmatpush1.bf16.msra.mxu0 0
        %843 = vmatprep.subr.bf16.mxu0 0
        %844 = vmatpush1.bf16.msra.mxu0 0
        %845 = vmatprep.mubr.bf16.mxu0 0
        %846 = vmatmul.mubr.bf16.gmra.mrb[0].mxu0 %v771
        %v847 = vpop.f32.mrb[0].mxu0
        %v848 = vadd.f32 0.0, %v847
        %v849 = vpop.f32.mrb[0].mxu0
        %v850 = vpop.f32.mrb[0].mxu0
        %v851 = vpop.f32.mrb[0].mxu0
        %852 = vdwg.mxu0
        %v853 = vadd.f32 %v587, %v708
        %vm854 = vcmask 253952
        %855 = vst.msk [vmem:[%s498] sm:$0x1] %vm854, %v853
        %v856 = vadd.f32 %v648, %v764
        %v857 = vmul.f32 %v856, 0.5
        %v858 = vmul.f32 %v857, 1.442695
        %v859 = vpow.pop %v858
        %860 = vst.msk [vmem:[%s504] sm:$0x1] %vm854, %v859
        %v861 = vadd.f32 %v587, %v808
        %862 = vst.msk [vmem:[%s510] sm:$0x1] %vm854, %v861
        %v863 = vadd.f32 %v648, %v848
        %v864 = vmul.f32 %v863, 0.5
        %v865 = vmul.f32 %v864, 1.442695
        %v866 = vpow.pop %v865
        %867 = vst.msk [vmem:[%s516] sm:$0x1] %vm854, %v866
        %s868 = sand.u32 %s274, 1
        %s869 = scalar_lea.sflag [#allocation4], %s868
        %s870 = sand.u32 %s274, 1
        %s871 = scalar_lea.vmem [#allocation7], %s870
        %s872 = sand.u32 %s36, 1
        %s873 = scalar_lea.sflag [#allocation9], %s872
        %s874 = sand.u32 %s300, 1
        %s875 = scalar_lea.vmem [#allocation8], %s874
        %s876 = sand.u32 %s36, 1
        %s877 = scalar_lea.sflag [#allocation9], %s876
        %s878 = sand.u32 %s326, 1
        %s879 = scalar_lea.vmem [#allocation10], %s878
        %s880 = sand.u32 %s352, 1
        %s881 = scalar_lea.sflag [#allocation12], %s880
        %s882 = sand.u32 %s352, 1
        %s883 = scalar_lea.vmem [#allocation11], %s882
        // Predicated region
        $region69: #{tpu_custom_call.1} parent=59 // pred_check
          %p884 = pneg %p284
        $region70: #{tpu_custom_call.1} parent=59 // pred_check_branch
          %886 = sbr.rel (%p884) target = $region72
        $region71: #{tpu_custom_call.1} parent=59 // pred_region
          %s888 = ssub.s32 16, 16
          %889 = vsyncadd %s869, %s888
          %s890 = smul.addr %s36, 16
          %s891 = scalar_lea.hbm %s10, %s890
          %s893 = sshll.u32 %s871, 4
          %s894 = int_to_ptr.vmem [resolvable:$true] %s893
          %896 = dma.vmem_to_hbm [thread:$0]  %s894, 16, %s891, %s869
        $region72: #{tpu_custom_call.1} parent=59 // pred_fallthru
          _
        // Predicated region
        $region73: #{tpu_custom_call.1} parent=59 // pred_check
          %p897 = pneg %p310
        $region74: #{tpu_custom_call.1} parent=59 // pred_check_branch
          %899 = sbr.rel (%p897) target = $region76
        $region75: #{tpu_custom_call.1} parent=59 // pred_region
          %s901 = ssub.s32 16, 16
          %902 = vsyncadd %s873, %s901
          %s903 = smul.addr %s36, 16
          %s904 = scalar_lea.hbm %s11, %s903
          %s906 = sshll.u32 %s875, 4
          %s907 = int_to_ptr.vmem [resolvable:$true] %s906
          %909 = dma.vmem_to_hbm [thread:$0]  %s907, 16, %s904, %s873
        $region76: #{tpu_custom_call.1} parent=59 // pred_fallthru
          _
        // Predicated region
        $region77: #{tpu_custom_call.1} parent=59 // pred_check
          %p910 = pneg %p336
        $region78: #{tpu_custom_call.1} parent=59 // pred_check_branch
          %912 = sbr.rel (%p910) target = $region80
        $region79: #{tpu_custom_call.1} parent=59 // pred_region
          %s914 = ssub.s32 16, 16
          %915 = vsyncadd %s877, %s914
          %s916 = smul.addr %s36, 16
          %s917 = scalar_lea.hbm %s12, %s916
          %s919 = sshll.u32 %s879, 4
          %s920 = int_to_ptr.vmem [resolvable:$true] %s919
          %922 = dma.vmem_to_hbm [thread:$0]  %s920, 16, %s917, %s877
        $region80: #{tpu_custom_call.1} parent=59 // pred_fallthru
          _
        // Predicated region
        $region81: #{tpu_custom_call.1} parent=59 // pred_check
          %p923 = pneg %p362
        $region82: #{tpu_custom_call.1} parent=59 // pred_check_branch
          %925 = sbr.rel (%p923) target = $region84
        $region83: #{tpu_custom_call.1} parent=59 // pred_region
          %s927 = ssub.s32 16, 16
          %928 = vsyncadd %s881, %s927
          %s929 = smul.addr %s36, 16
          %s930 = scalar_lea.hbm %s13, %s929
          %s932 = sshll.u32 %s883, 4
          %s933 = int_to_ptr.vmem [resolvable:$true] %s932
          %935 = dma.vmem_to_hbm [thread:$0]  %s933, 16, %s930, %s881
        $region84: #{tpu_custom_call.1} parent=59 // pred_fallthru
          _
      $region60: #{tpu_custom_call.1} parent=5 // pred_fallthru
        _
      %p936 = scmp.le.s32.totalorder 2, %s31
      // Predicated region
      $region85: #{tpu_custom_call.1} parent=5 // pred_check
        %p937 = pneg %p936
      $region86: #{tpu_custom_call.1} parent=5 // pred_check_branch
        %939 = sbr.rel (%p937) target = $region88
      $region87: #{tpu_custom_call.1} parent=5 // pred_region
        %s940 = ssub.s32 %s31, 2
        // Predicated region
        $region89: #{tpu_custom_call.1} parent=87 // pred_check
          %p941 = pneg %p290
        $region90: #{tpu_custom_call.1} parent=87 // pred_check_branch
          %943 = sbr.rel (%p941) target = $region92
        $region91: #{tpu_custom_call.1} parent=87 // pred_region
          %s944 = sand.u32 %s275, 1
          %s945 = scalar_lea.sflag [#allocation4], %s944
          %s946 = sand.u32 %s275, 1
          %s947 = scalar_lea.vmem [#allocation7], %s946
          %948 = dma.done %s945, 16
        $region92: #{tpu_custom_call.1} parent=87 // pred_fallthru
          _
        // Predicated region
        $region93: #{tpu_custom_call.1} parent=87 // pred_check
          %p949 = pneg %p316
        $region94: #{tpu_custom_call.1} parent=87 // pred_check_branch
          %951 = sbr.rel (%p949) target = $region96
        $region95: #{tpu_custom_call.1} parent=87 // pred_region
          %s952 = sand.u32 %s37, 1
          %s953 = scalar_lea.sflag [#allocation9], %s952
          %s954 = sand.u32 %s301, 1
          %s955 = scalar_lea.vmem [#allocation8], %s954
          %956 = dma.done %s953, 16
        $region96: #{tpu_custom_call.1} parent=87 // pred_fallthru
          _
        // Predicated region
        $region97: #{tpu_custom_call.1} parent=87 // pred_check
          %p957 = pneg %p342
        $region98: #{tpu_custom_call.1} parent=87 // pred_check_branch
          %959 = sbr.rel (%p957) target = $region100
        $region99: #{tpu_custom_call.1} parent=87 // pred_region
          %s960 = sand.u32 %s37, 1
          %s961 = scalar_lea.sflag [#allocation9], %s960
          %s962 = sand.u32 %s327, 1
          %s963 = scalar_lea.vmem [#allocation10], %s962
          %964 = dma.done %s961, 16
        $region100: #{tpu_custom_call.1} parent=87 // pred_fallthru
          _
        // Predicated region
        $region101: #{tpu_custom_call.1} parent=87 // pred_check
          %p965 = pneg %p368
        $region102: #{tpu_custom_call.1} parent=87 // pred_check_branch
          %967 = sbr.rel (%p965) target = $region104
        $region103: #{tpu_custom_call.1} parent=87 // pred_region
          %s968 = sand.u32 %s353, 1
          %s969 = scalar_lea.sflag [#allocation12], %s968
          %s970 = sand.u32 %s353, 1
          %s971 = scalar_lea.vmem [#allocation11], %s970
          %972 = dma.done %s969, 16
        $region104: #{tpu_custom_call.1} parent=87 // pred_fallthru
          _
      $region88: #{tpu_custom_call.1} parent=5 // pred_fallthru
        _
    $region6: #{tpu_custom_call.1} parent=1 // loop_footer
      %s35 = sadd.s32 1, %s31
    $region7: #{tpu_custom_call.1} parent=1 // loop_footer_branch
      %30 = sbr.rel target = $region3
    $region8: #{tpu_custom_call.1} parent=1 // loop_exit
      _
    %973 = vsyncpa [#allocation3], 1
    %s974 = scalar_lea.sflag [#allocation3], 1
    %975 = vsyncpa %s974, 1
    %976 = vsyncpa [#allocation6], 1
    %977 = vsyncpa [#allocation4], 1
    %s978 = scalar_lea.sflag [#allocation4], 1
    %979 = vsyncpa %s978, 1
    %980 = vsyncpa [#allocation9], 1
    %s981 = scalar_lea.sflag [#allocation9], 1
    %982 = vsyncpa %s981, 1
    %983 = vsyncpa [#allocation12], 1
    %s984 = scalar_lea.sflag [#allocation12], 1
    %985 = vsyncpa %s984, 1

</llo_original>
